<compile_context>
chip_gen: v7x
topology: tpu7x:2x2x1
jax: 0.10.0
libtpu: 0.0.40
codegen_flags: <defaults>
</compile_context>

<pallas_src>
from functools import partial

import jax
import jax.numpy as jnp
from jax.experimental import pallas as pl
from jax.experimental.pallas import tpu as pltpu


def _round_up(x: int, m: int) -> int:
    return ((x + m - 1) // m) * m


def _mha_kernel(q_ref, k_ref, v_ref, o_ref, *, num_heads, head_dim, scale):
    """Per-row (batch*seq) attention over the heads axis.

    Refs are (tile, H*D) lane-dense VMEM tiles; head h occupies lanes
    [h*D, (h+1)*D).  All compute is VPU/XLU/EUP; the kernel is HBM-bound.
    """
    H, D = num_heads, head_dim

    # Per-head lane slices.  Keep q/k in the input dtype (bf16 stays bf16 until
    # the multiply); v is accumulated in f32.
    q_h = [q_ref[:, i * D:(i + 1) * D] for i in range(H)]
    k_h = [k_ref[:, j * D:(j + 1) * D] for j in range(H)]
    v_h = [v_ref[:, j * D:(j + 1) * D].astype(jnp.float32) for j in range(H)]

    # scores[i][j] : (tile, 1) f32 = scale * sum_d q_i[:, d] * k_j[:, d]
    scores = [
        [jnp.sum((q_h[i] * k_h[j]).astype(jnp.float32), axis=-1, keepdims=True)
         * scale
         for j in range(H)]
        for i in range(H)
    ]

    for i in range(H):
        # Numerically-stable softmax over the (tiny) heads axis j.
        m = scores[i][0]
        for j in range(1, H):
            m = jnp.maximum(m, scores[i][j])
        e = [jnp.exp(scores[i][j] - m) for j in range(H)]
        denom = e[0]
        for j in range(1, H):
            denom = denom + e[j]
        # EUP reciprocal (separate VLIW slot) + one Newton refinement step to
        # recover full f32 accuracy without a VPU divide sequence.
        inv = pl.reciprocal(denom, approx=True)
        inv = inv * (2.0 - denom * inv)

        acc = (e[0] * inv) * v_h[0]
        for j in range(1, H):
            acc = acc + (e[j] * inv) * v_h[j]
        o_ref[:, i * D:(i + 1) * D] = acc.astype(o_ref.dtype)


def multi_head_attention(query, key, value, *, scale=None, block_rows=2048,
                         vmem_limit_bytes=48 * 1024 * 1024):
    """Pallas forward of MultiHeadAttention (causal=False, mask=None, dropout=0).

    query/key/value: (batch, seq, heads, head_dim), same shape & dtype.
    Returns a tensor of the same shape/dtype as query.
    """
    B, S, H, D = query.shape
    assert key.shape == query.shape and value.shape == query.shape
    if scale is None:
        scale = float(D) ** (-0.5)

    N = B * S
    HD = H * D
    qf = query.reshape(N, HD)
    kf = key.reshape(N, HD)
    vf = value.reshape(N, HD)

    # Tile the flattened (batch*seq) axis in large dense blocks.  g grid steps,
    # tile a multiple of 8 sublanes; zero-padding is <= ~8*g rows (zero rows
    # are self-contained -- uniform softmax over zero values -- and sliced off
    # afterwards).  block_rows=2048 keeps the double-buffered working set
    # (4 arrays x 2 buffers x tile x H*D x itemsize) well under the scoped
    # VMEM limit on v5e / v6e / v7x alike.
    g = max(1, int(pl.cdiv(N, block_rows)))
    tile = max(8, _round_up(int(pl.cdiv(N, g)), 8))
    Np = g * tile
    if Np != N:
        pad = Np - N
        qf = jnp.pad(qf, ((0, pad), (0, 0)))
        kf = jnp.pad(kf, ((0, pad), (0, 0)))
        vf = jnp.pad(vf, ((0, pad), (0, 0)))

    spec = pl.BlockSpec((tile, HD), lambda i: (i, 0))
    itemsize = jnp.dtype(query.dtype).itemsize
    cost = pl.CostEstimate(
        flops=4 * Np * H * H * D,
        transcendentals=Np * H * (H + 1),
        bytes_accessed=4 * Np * HD * itemsize,
    )

    out_flat = pl.pallas_call(
        partial(_mha_kernel, num_heads=H, head_dim=D, scale=scale),
        out_shape=jax.ShapeDtypeStruct((Np, HD), query.dtype),
        grid_spec=pltpu.PrefetchScalarGridSpec(
            num_scalar_prefetch=0,
            grid=(g,),
            in_specs=[spec, spec, spec],
            out_specs=spec,
        ),
        compiler_params=pltpu.CompilerParams(
            dimension_semantics=("parallel",),
            vmem_limit_bytes=vmem_limit_bytes,
        ),
        cost_estimate=cost,
    )(qf, kf, vf)

    if Np != N:
        out_flat = out_flat[:N]
    return out_flat.reshape(B, S, H, D)


def _reference(query, key, value, *, scale=None):
    """Pure-JAX reference mirroring the torch fallback path."""
    D = query.shape[-1]
    if scale is None:
        scale = float(D) ** (-0.5)
    scores = jnp.einsum("bsid,bsjd->bsij", query.astype(jnp.float32),
                        key.astype(jnp.float32)) * scale
    w = jax.nn.softmax(scores, axis=-1)
    out = jnp.einsum("bsij,bsjd->bsid", w, value.astype(jnp.float32))
    return out.astype(query.dtype)


if __name__ == "__main__":
    # Small deterministic inputs consistent with the module's expected 4-D
    # (batch, seq, heads, head_dim) tensors.  H*D = 128 -> lane-dense layout.
    B, S, H, D = 2, 8, 4, 32
    key0 = jax.random.PRNGKey(0)
    kq, kk, kv = jax.random.split(key0, 3)
    q = jax.random.normal(kq, (B, S, H, D), dtype=jnp.float32)
    k = jax.random.normal(kk, (B, S, H, D), dtype=jnp.float32)
    v = jax.random.normal(kv, (B, S, H, D), dtype=jnp.float32)

    out = jax.block_until_ready(multi_head_attention(q, k, v))
    ref = jax.block_until_ready(_reference(q, k, v))

    assert out.shape == (B, S, H, D)
    max_err = float(jnp.max(jnp.abs(out - ref)))
    assert jnp.allclose(out, ref, atol=1e-4, rtol=1e-4), (
        f"mismatch vs reference (max abs err {max_err})")

    # TODO(synk): attention dropout (p>0) and the optional mask/causal branches
    # are disabled by the module defaults and are not implemented here.
    print("KERNEL_OK")
</pallas_src>

<mosaic_0001>
module attributes {stable_mosaic.version = 11 : i64} {
  func.func @_mha_kernel(%arg0: i32, %arg1: memref<16x128xf32, #tpu.memory_space<vmem>>, %arg2: memref<16x128xf32, #tpu.memory_space<vmem>>, %arg3: memref<16x128xf32, #tpu.memory_space<vmem>>, %arg4: memref<16x128xf32, #tpu.memory_space<vmem>>) attributes {dimension_semantics = [#tpu.dimension_semantics<parallel>], iteration_bounds = array<i64: 1>, scalar_prefetch = 0 : i64, scratch_operands = 0 : i64, tpu.core_type = #tpu.core_type<tc>, window_params = [{transform_indices = @transform_0, window_bounds = array<i64: 16, 128>}, {transform_indices = @transform_1, window_bounds = array<i64: 16, 128>}, {transform_indices = @transform_2, window_bounds = array<i64: 16, 128>}, {transform_indices = @transform_3, window_bounds = array<i64: 16, 128>}]} {
    %c0 = arith.constant 0 : index
    %c0_0 = arith.constant 0 : index
    %0 = vector.load %arg1[%c0, %c0_0] : memref<16x128xf32, #tpu.memory_space<vmem>>, vector<16x32xf32>
    %c0_1 = arith.constant 0 : index
    %c32 = arith.constant 32 : index
    %1 = vector.load %arg1[%c0_1, %c32] : memref<16x128xf32, #tpu.memory_space<vmem>>, vector<16x32xf32>
    %c0_2 = arith.constant 0 : index
    %c64 = arith.constant 64 : index
    %2 = vector.load %arg1[%c0_2, %c64] : memref<16x128xf32, #tpu.memory_space<vmem>>, vector<16x32xf32>
    %c0_3 = arith.constant 0 : index
    %c96 = arith.constant 96 : index
    %3 = vector.load %arg1[%c0_3, %c96] : memref<16x128xf32, #tpu.memory_space<vmem>>, vector<16x32xf32>
    %c0_4 = arith.constant 0 : index
    %c0_5 = arith.constant 0 : index
    %4 = vector.load %arg2[%c0_4, %c0_5] : memref<16x128xf32, #tpu.memory_space<vmem>>, vector<16x32xf32>
    %c0_6 = arith.constant 0 : index
    %c32_7 = arith.constant 32 : index
    %5 = vector.load %arg2[%c0_6, %c32_7] : memref<16x128xf32, #tpu.memory_space<vmem>>, vector<16x32xf32>
    %c0_8 = arith.constant 0 : index
    %c64_9 = arith.constant 64 : index
    %6 = vector.load %arg2[%c0_8, %c64_9] : memref<16x128xf32, #tpu.memory_space<vmem>>, vector<16x32xf32>
    %c0_10 = arith.constant 0 : index
    %c96_11 = arith.constant 96 : index
    %7 = vector.load %arg2[%c0_10, %c96_11] : memref<16x128xf32, #tpu.memory_space<vmem>>, vector<16x32xf32>
    %c0_12 = arith.constant 0 : index
    %c0_13 = arith.constant 0 : index
    %8 = vector.load %arg3[%c0_12, %c0_13] : memref<16x128xf32, #tpu.memory_space<vmem>>, vector<16x32xf32>
    %c0_14 = arith.constant 0 : index
    %c32_15 = arith.constant 32 : index
    %9 = vector.load %arg3[%c0_14, %c32_15] : memref<16x128xf32, #tpu.memory_space<vmem>>, vector<16x32xf32>
    %c0_16 = arith.constant 0 : index
    %c64_17 = arith.constant 64 : index
    %10 = vector.load %arg3[%c0_16, %c64_17] : memref<16x128xf32, #tpu.memory_space<vmem>>, vector<16x32xf32>
    %c0_18 = arith.constant 0 : index
    %c96_19 = arith.constant 96 : index
    %11 = vector.load %arg3[%c0_18, %c96_19] : memref<16x128xf32, #tpu.memory_space<vmem>>, vector<16x32xf32>
    %12 = arith.mulf %0, %4 : vector<16x32xf32>
    %cst = arith.constant dense<0.000000e+00> : vector<16xf32>
    %13 = vector.multi_reduction <add>, %12, %cst [1] : vector<16x32xf32> to vector<16xf32>
    %14 = vector.shape_cast %13 : vector<16xf32> to vector<16x1xf32>
    %cst_20 = arith.constant 0.176776692 : f32
    %15 = vector.broadcast %cst_20 : f32 to vector<16x1xf32>
    %16 = arith.mulf %14, %15 : vector<16x1xf32>
    %17 = arith.mulf %0, %5 : vector<16x32xf32>
    %cst_21 = arith.constant dense<0.000000e+00> : vector<16xf32>
    %18 = vector.multi_reduction <add>, %17, %cst_21 [1] : vector<16x32xf32> to vector<16xf32>
    %19 = vector.shape_cast %18 : vector<16xf32> to vector<16x1xf32>
    %cst_22 = arith.constant 0.176776692 : f32
    %20 = vector.broadcast %cst_22 : f32 to vector<16x1xf32>
    %21 = arith.mulf %19, %20 : vector<16x1xf32>
    %22 = arith.mulf %0, %6 : vector<16x32xf32>
    %cst_23 = arith.constant dense<0.000000e+00> : vector<16xf32>
    %23 = vector.multi_reduction <add>, %22, %cst_23 [1] : vector<16x32xf32> to vector<16xf32>
    %24 = vector.shape_cast %23 : vector<16xf32> to vector<16x1xf32>
    %cst_24 = arith.constant 0.176776692 : f32
    %25 = vector.broadcast %cst_24 : f32 to vector<16x1xf32>
    %26 = arith.mulf %24, %25 : vector<16x1xf32>
    %27 = arith.mulf %0, %7 : vector<16x32xf32>
    %cst_25 = arith.constant dense<0.000000e+00> : vector<16xf32>
    %28 = vector.multi_reduction <add>, %27, %cst_25 [1] : vector<16x32xf32> to vector<16xf32>
    %29 = vector.shape_cast %28 : vector<16xf32> to vector<16x1xf32>
    %cst_26 = arith.constant 0.176776692 : f32
    %30 = vector.broadcast %cst_26 : f32 to vector<16x1xf32>
    %31 = arith.mulf %29, %30 : vector<16x1xf32>
    %32 = arith.mulf %1, %4 : vector<16x32xf32>
    %cst_27 = arith.constant dense<0.000000e+00> : vector<16xf32>
    %33 = vector.multi_reduction <add>, %32, %cst_27 [1] : vector<16x32xf32> to vector<16xf32>
    %34 = vector.shape_cast %33 : vector<16xf32> to vector<16x1xf32>
    %cst_28 = arith.constant 0.176776692 : f32
    %35 = vector.broadcast %cst_28 : f32 to vector<16x1xf32>
    %36 = arith.mulf %34, %35 : vector<16x1xf32>
    %37 = arith.mulf %1, %5 : vector<16x32xf32>
    %cst_29 = arith.constant dense<0.000000e+00> : vector<16xf32>
    %38 = vector.multi_reduction <add>, %37, %cst_29 [1] : vector<16x32xf32> to vector<16xf32>
    %39 = vector.shape_cast %38 : vector<16xf32> to vector<16x1xf32>
    %cst_30 = arith.constant 0.176776692 : f32
    %40 = vector.broadcast %cst_30 : f32 to vector<16x1xf32>
    %41 = arith.mulf %39, %40 : vector<16x1xf32>
    %42 = arith.mulf %1, %6 : vector<16x32xf32>
    %cst_31 = arith.constant dense<0.000000e+00> : vector<16xf32>
    %43 = vector.multi_reduction <add>, %42, %cst_31 [1] : vector<16x32xf32> to vector<16xf32>
    %44 = vector.shape_cast %43 : vector<16xf32> to vector<16x1xf32>
    %cst_32 = arith.constant 0.176776692 : f32
    %45 = vector.broadcast %cst_32 : f32 to vector<16x1xf32>
    %46 = arith.mulf %44, %45 : vector<16x1xf32>
    %47 = arith.mulf %1, %7 : vector<16x32xf32>
    %cst_33 = arith.constant dense<0.000000e+00> : vector<16xf32>
    %48 = vector.multi_reduction <add>, %47, %cst_33 [1] : vector<16x32xf32> to vector<16xf32>
    %49 = vector.shape_cast %48 : vector<16xf32> to vector<16x1xf32>
    %cst_34 = arith.constant 0.176776692 : f32
    %50 = vector.broadcast %cst_34 : f32 to vector<16x1xf32>
    %51 = arith.mulf %49, %50 : vector<16x1xf32>
    %52 = arith.mulf %2, %4 : vector<16x32xf32>
    %cst_35 = arith.constant dense<0.000000e+00> : vector<16xf32>
    %53 = vector.multi_reduction <add>, %52, %cst_35 [1] : vector<16x32xf32> to vector<16xf32>
    %54 = vector.shape_cast %53 : vector<16xf32> to vector<16x1xf32>
    %cst_36 = arith.constant 0.176776692 : f32
    %55 = vector.broadcast %cst_36 : f32 to vector<16x1xf32>
    %56 = arith.mulf %54, %55 : vector<16x1xf32>
    %57 = arith.mulf %2, %5 : vector<16x32xf32>
    %cst_37 = arith.constant dense<0.000000e+00> : vector<16xf32>
    %58 = vector.multi_reduction <add>, %57, %cst_37 [1] : vector<16x32xf32> to vector<16xf32>
    %59 = vector.shape_cast %58 : vector<16xf32> to vector<16x1xf32>
    %cst_38 = arith.constant 0.176776692 : f32
    %60 = vector.broadcast %cst_38 : f32 to vector<16x1xf32>
    %61 = arith.mulf %59, %60 : vector<16x1xf32>
    %62 = arith.mulf %2, %6 : vector<16x32xf32>
    %cst_39 = arith.constant dense<0.000000e+00> : vector<16xf32>
    %63 = vector.multi_reduction <add>, %62, %cst_39 [1] : vector<16x32xf32> to vector<16xf32>
    %64 = vector.shape_cast %63 : vector<16xf32> to vector<16x1xf32>
    %cst_40 = arith.constant 0.176776692 : f32
    %65 = vector.broadcast %cst_40 : f32 to vector<16x1xf32>
    %66 = arith.mulf %64, %65 : vector<16x1xf32>
    %67 = arith.mulf %2, %7 : vector<16x32xf32>
    %cst_41 = arith.constant dense<0.000000e+00> : vector<16xf32>
    %68 = vector.multi_reduction <add>, %67, %cst_41 [1] : vector<16x32xf32> to vector<16xf32>
    %69 = vector.shape_cast %68 : vector<16xf32> to vector<16x1xf32>
    %cst_42 = arith.constant 0.176776692 : f32
    %70 = vector.broadcast %cst_42 : f32 to vector<16x1xf32>
    %71 = arith.mulf %69, %70 : vector<16x1xf32>
    %72 = arith.mulf %3, %4 : vector<16x32xf32>
    %cst_43 = arith.constant dense<0.000000e+00> : vector<16xf32>
    %73 = vector.multi_reduction <add>, %72, %cst_43 [1] : vector<16x32xf32> to vector<16xf32>
    %74 = vector.shape_cast %73 : vector<16xf32> to vector<16x1xf32>
    %cst_44 = arith.constant 0.176776692 : f32
    %75 = vector.broadcast %cst_44 : f32 to vector<16x1xf32>
    %76 = arith.mulf %74, %75 : vector<16x1xf32>
    %77 = arith.mulf %3, %5 : vector<16x32xf32>
    %cst_45 = arith.constant dense<0.000000e+00> : vector<16xf32>
    %78 = vector.multi_reduction <add>, %77, %cst_45 [1] : vector<16x32xf32> to vector<16xf32>
    %79 = vector.shape_cast %78 : vector<16xf32> to vector<16x1xf32>
    %cst_46 = arith.constant 0.176776692 : f32
    %80 = vector.broadcast %cst_46 : f32 to vector<16x1xf32>
    %81 = arith.mulf %79, %80 : vector<16x1xf32>
    %82 = arith.mulf %3, %6 : vector<16x32xf32>
    %cst_47 = arith.constant dense<0.000000e+00> : vector<16xf32>
    %83 = vector.multi_reduction <add>, %82, %cst_47 [1] : vector<16x32xf32> to vector<16xf32>
    %84 = vector.shape_cast %83 : vector<16xf32> to vector<16x1xf32>
    %cst_48 = arith.constant 0.176776692 : f32
    %85 = vector.broadcast %cst_48 : f32 to vector<16x1xf32>
    %86 = arith.mulf %84, %85 : vector<16x1xf32>
    %87 = arith.mulf %3, %7 : vector<16x32xf32>
    %cst_49 = arith.constant dense<0.000000e+00> : vector<16xf32>
    %88 = vector.multi_reduction <add>, %87, %cst_49 [1] : vector<16x32xf32> to vector<16xf32>
    %89 = vector.shape_cast %88 : vector<16xf32> to vector<16x1xf32>
    %cst_50 = arith.constant 0.176776692 : f32
    %90 = vector.broadcast %cst_50 : f32 to vector<16x1xf32>
    %91 = arith.mulf %89, %90 : vector<16x1xf32>
    %92 = arith.maximumf %16, %21 : vector<16x1xf32>
    %93 = arith.maximumf %92, %26 : vector<16x1xf32>
    %94 = arith.maximumf %93, %31 : vector<16x1xf32>
    %95 = arith.subf %16, %94 : vector<16x1xf32>
    %96 = math.exp %95 : vector<16x1xf32>
    %97 = arith.subf %21, %94 : vector<16x1xf32>
    %98 = math.exp %97 : vector<16x1xf32>
    %99 = arith.subf %26, %94 : vector<16x1xf32>
    %100 = math.exp %99 : vector<16x1xf32>
    %101 = arith.subf %31, %94 : vector<16x1xf32>
    %102 = math.exp %101 : vector<16x1xf32>
    %103 = arith.addf %96, %98 : vector<16x1xf32>
    %104 = arith.addf %103, %100 : vector<16x1xf32>
    %105 = arith.addf %104, %102 : vector<16x1xf32>
    %106 = tpu.reciprocal %105 {approx = true} : vector<16x1xf32> -> vector<16x1xf32>
    %107 = arith.mulf %105, %106 : vector<16x1xf32>
    %cst_51 = arith.constant 2.000000e+00 : f32
    %108 = vector.broadcast %cst_51 : f32 to vector<16x1xf32>
    %109 = arith.subf %108, %107 : vector<16x1xf32>
    %110 = arith.mulf %106, %109 : vector<16x1xf32>
    %111 = arith.mulf %96, %110 : vector<16x1xf32>
    %112 = vector.broadcast %111 : vector<16x1xf32> to vector<16x32xf32>
    %113 = arith.mulf %112, %8 : vector<16x32xf32>
    %114 = arith.mulf %98, %110 : vector<16x1xf32>
    %115 = vector.broadcast %114 : vector<16x1xf32> to vector<16x32xf32>
    %116 = arith.mulf %115, %9 : vector<16x32xf32>
    %117 = arith.addf %113, %116 : vector<16x32xf32>
    %118 = arith.mulf %100, %110 : vector<16x1xf32>
    %119 = vector.broadcast %118 : vector<16x1xf32> to vector<16x32xf32>
    %120 = arith.mulf %119, %10 : vector<16x32xf32>
    %121 = arith.addf %117, %120 : vector<16x32xf32>
    %122 = arith.mulf %102, %110 : vector<16x1xf32>
    %123 = vector.broadcast %122 : vector<16x1xf32> to vector<16x32xf32>
    %124 = arith.mulf %123, %11 : vector<16x32xf32>
    %125 = arith.addf %121, %124 : vector<16x32xf32>
    %c0_52 = arith.constant 0 : index
    %c0_53 = arith.constant 0 : index
    %126 = vector.load %arg4[%c0_52, %c0_53] : memref<16x128xf32, #tpu.memory_space<vmem>>, vector<16x32xf32>
    tpu.vector_store %arg4[%c0_52, %c0_53], %125 {strides = array<i32>} : memref<16x128xf32, #tpu.memory_space<vmem>>, vector<16x32xf32>,
    %127 = arith.maximumf %36, %41 : vector<16x1xf32>
    %128 = arith.maximumf %127, %46 : vector<16x1xf32>
    %129 = arith.maximumf %128, %51 : vector<16x1xf32>
    %130 = arith.subf %36, %129 : vector<16x1xf32>
    %131 = math.exp %130 : vector<16x1xf32>
    %132 = arith.subf %41, %129 : vector<16x1xf32>
    %133 = math.exp %132 : vector<16x1xf32>
    %134 = arith.subf %46, %129 : vector<16x1xf32>
    %135 = math.exp %134 : vector<16x1xf32>
    %136 = arith.subf %51, %129 : vector<16x1xf32>
    %137 = math.exp %136 : vector<16x1xf32>
    %138 = arith.addf %131, %133 : vector<16x1xf32>
    %139 = arith.addf %138, %135 : vector<16x1xf32>
    %140 = arith.addf %139, %137 : vector<16x1xf32>
    %141 = tpu.reciprocal %140 {approx = true} : vector<16x1xf32> -> vector<16x1xf32>
    %142 = arith.mulf %140, %141 : vector<16x1xf32>
    %cst_54 = arith.constant 2.000000e+00 : f32
    %143 = vector.broadcast %cst_54 : f32 to vector<16x1xf32>
    %144 = arith.subf %143, %142 : vector<16x1xf32>
    %145 = arith.mulf %141, %144 : vector<16x1xf32>
    %146 = arith.mulf %131, %145 : vector<16x1xf32>
    %147 = vector.broadcast %146 : vector<16x1xf32> to vector<16x32xf32>
    %148 = arith.mulf %147, %8 : vector<16x32xf32>
    %149 = arith.mulf %133, %145 : vector<16x1xf32>
    %150 = vector.broadcast %149 : vector<16x1xf32> to vector<16x32xf32>
    %151 = arith.mulf %150, %9 : vector<16x32xf32>
    %152 = arith.addf %148, %151 : vector<16x32xf32>
    %153 = arith.mulf %135, %145 : vector<16x1xf32>
    %154 = vector.broadcast %153 : vector<16x1xf32> to vector<16x32xf32>
    %155 = arith.mulf %154, %10 : vector<16x32xf32>
    %156 = arith.addf %152, %155 : vector<16x32xf32>
    %157 = arith.mulf %137, %145 : vector<16x1xf32>
    %158 = vector.broadcast %157 : vector<16x1xf32> to vector<16x32xf32>
    %159 = arith.mulf %158, %11 : vector<16x32xf32>
    %160 = arith.addf %156, %159 : vector<16x32xf32>
    %c0_55 = arith.constant 0 : index
    %c32_56 = arith.constant 32 : index
    %161 = vector.load %arg4[%c0_55, %c32_56] : memref<16x128xf32, #tpu.memory_space<vmem>>, vector<16x32xf32>
    tpu.vector_store %arg4[%c0_55, %c32_56], %160 {strides = array<i32>} : memref<16x128xf32, #tpu.memory_space<vmem>>, vector<16x32xf32>,
    %162 = arith.maximumf %56, %61 : vector<16x1xf32>
    %163 = arith.maximumf %162, %66 : vector<16x1xf32>
    %164 = arith.maximumf %163, %71 : vector<16x1xf32>
    %165 = arith.subf %56, %164 : vector<16x1xf32>
    %166 = math.exp %165 : vector<16x1xf32>
    %167 = arith.subf %61, %164 : vector<16x1xf32>
    %168 = math.exp %167 : vector<16x1xf32>
    %169 = arith.subf %66, %164 : vector<16x1xf32>
    %170 = math.exp %169 : vector<16x1xf32>
    %171 = arith.subf %71, %164 : vector<16x1xf32>
    %172 = math.exp %171 : vector<16x1xf32>
    %173 = arith.addf %166, %168 : vector<16x1xf32>
    %174 = arith.addf %173, %170 : vector<16x1xf32>
    %175 = arith.addf %174, %172 : vector<16x1xf32>
    %176 = tpu.reciprocal %175 {approx = true} : vector<16x1xf32> -> vector<16x1xf32>
    %177 = arith.mulf %175, %176 : vector<16x1xf32>
    %cst_57 = arith.constant 2.000000e+00 : f32
    %178 = vector.broadcast %cst_57 : f32 to vector<16x1xf32>
    %179 = arith.subf %178, %177 : vector<16x1xf32>
    %180 = arith.mulf %176, %179 : vector<16x1xf32>
    %181 = arith.mulf %166, %180 : vector<16x1xf32>
    %182 = vector.broadcast %181 : vector<16x1xf32> to vector<16x32xf32>
    %183 = arith.mulf %182, %8 : vector<16x32xf32>
    %184 = arith.mulf %168, %180 : vector<16x1xf32>
    %185 = vector.broadcast %184 : vector<16x1xf32> to vector<16x32xf32>
    %186 = arith.mulf %185, %9 : vector<16x32xf32>
    %187 = arith.addf %183, %186 : vector<16x32xf32>
    %188 = arith.mulf %170, %180 : vector<16x1xf32>
    %189 = vector.broadcast %188 : vector<16x1xf32> to vector<16x32xf32>
    %190 = arith.mulf %189, %10 : vector<16x32xf32>
    %191 = arith.addf %187, %190 : vector<16x32xf32>
    %192 = arith.mulf %172, %180 : vector<16x1xf32>
    %193 = vector.broadcast %192 : vector<16x1xf32> to vector<16x32xf32>
    %194 = arith.mulf %193, %11 : vector<16x32xf32>
    %195 = arith.addf %191, %194 : vector<16x32xf32>
    %c0_58 = arith.constant 0 : index
    %c64_59 = arith.constant 64 : index
    %196 = vector.load %arg4[%c0_58, %c64_59] : memref<16x128xf32, #tpu.memory_space<vmem>>, vector<16x32xf32>
    tpu.vector_store %arg4[%c0_58, %c64_59], %195 {strides = array<i32>} : memref<16x128xf32, #tpu.memory_space<vmem>>, vector<16x32xf32>,
    %197 = arith.maximumf %76, %81 : vector<16x1xf32>
    %198 = arith.maximumf %197, %86 : vector<16x1xf32>
    %199 = arith.maximumf %198, %91 : vector<16x1xf32>
    %200 = arith.subf %76, %199 : vector<16x1xf32>
    %201 = math.exp %200 : vector<16x1xf32>
    %202 = arith.subf %81, %199 : vector<16x1xf32>
    %203 = math.exp %202 : vector<16x1xf32>
    %204 = arith.subf %86, %199 : vector<16x1xf32>
    %205 = math.exp %204 : vector<16x1xf32>
    %206 = arith.subf %91, %199 : vector<16x1xf32>
    %207 = math.exp %206 : vector<16x1xf32>
    %208 = arith.addf %201, %203 : vector<16x1xf32>
    %209 = arith.addf %208, %205 : vector<16x1xf32>
    %210 = arith.addf %209, %207 : vector<16x1xf32>
    %211 = tpu.reciprocal %210 {approx = true} : vector<16x1xf32> -> vector<16x1xf32>
    %212 = arith.mulf %210, %211 : vector<16x1xf32>
    %cst_60 = arith.constant 2.000000e+00 : f32
    %213 = vector.broadcast %cst_60 : f32 to vector<16x1xf32>
    %214 = arith.subf %213, %212 : vector<16x1xf32>
    %215 = arith.mulf %211, %214 : vector<16x1xf32>
    %216 = arith.mulf %201, %215 : vector<16x1xf32>
    %217 = vector.broadcast %216 : vector<16x1xf32> to vector<16x32xf32>
    %218 = arith.mulf %217, %8 : vector<16x32xf32>
    %219 = arith.mulf %203, %215 : vector<16x1xf32>
    %220 = vector.broadcast %219 : vector<16x1xf32> to vector<16x32xf32>
    %221 = arith.mulf %220, %9 : vector<16x32xf32>
    %222 = arith.addf %218, %221 : vector<16x32xf32>
    %223 = arith.mulf %205, %215 : vector<16x1xf32>
    %224 = vector.broadcast %223 : vector<16x1xf32> to vector<16x32xf32>
    %225 = arith.mulf %224, %10 : vector<16x32xf32>
    %226 = arith.addf %222, %225 : vector<16x32xf32>
    %227 = arith.mulf %207, %215 : vector<16x1xf32>
    %228 = vector.broadcast %227 : vector<16x1xf32> to vector<16x32xf32>
    %229 = arith.mulf %228, %11 : vector<16x32xf32>
    %230 = arith.addf %226, %229 : vector<16x32xf32>
    %c0_61 = arith.constant 0 : index
    %c96_62 = arith.constant 96 : index
    %231 = vector.load %arg4[%c0_61, %c96_62] : memref<16x128xf32, #tpu.memory_space<vmem>>, vector<16x32xf32>
    tpu.vector_store %arg4[%c0_61, %c96_62], %230 {strides = array<i32>} : memref<16x128xf32, #tpu.memory_space<vmem>>, vector<16x32xf32>,
    return
  }
  func.func @transform_0(%arg0: i32) -> (i32, i32) {
    %c0_i32 = arith.constant 0 : i32
    %c0_i32_0 = arith.constant 0 : i32
    return %arg0, %c0_i32 : i32, i32
  }
  func.func @transform_1(%arg0: i32) -> (i32, i32) {
    %c0_i32 = arith.constant 0 : i32
    %c0_i32_0 = arith.constant 0 : i32
    return %arg0, %c0_i32 : i32, i32
  }
  func.func @transform_2(%arg0: i32) -> (i32, i32) {
    %c0_i32 = arith.constant 0 : i32
    %c0_i32_0 = arith.constant 0 : i32
    return %arg0, %c0_i32 : i32, i32
  }
  func.func @transform_3(%arg0: i32) -> (i32, i32) {
    %c0_i32 = arith.constant 0 : i32
    %c0_i32_0 = arith.constant 0 : i32
    return %arg0, %c0_i32 : i32, i32
  }
}

</mosaic_0001>

<llo_original>
// kernel: tpu_custom_call.1
$region0: #{tpu_custom_call.1}
  #allocation0 [shape = 'u32[]', space=smem, size = 0x4, offset = 0x4, fixed_abs, tag = 'smem constant byte address 0x4 - core index']
  #allocation1 [shape = 'u32[144,128]{1,0:T(1,128)}', space=vmem, size = 0x12000, scoped, tag = 'internal scratch']
  %s0 = inlined_call_operand.hbm [shape: f32[16,128], index: 0, kind: input, shape index: {}]
  %s1 = inlined_call_operand.hbm [shape: f32[16,128], index: 1, kind: input, shape index: {}]
  %s2 = inlined_call_operand.hbm [shape: f32[16,128], index: 2, kind: input, shape index: {}]
  %s3 = inlined_call_operand.hbm [shape: f32[16,128], index: 3, kind: output, shape index: {}]
  %s4 = sld [smem:[#allocation0]]
  $region34: #{tpu_custom_call.1} parent=0
    _
  %s6 = ssub.s32 1, %s4
  %s7 = scalar_select 0, %s6, %s4
  $region1: #{tpu_custom_call.1} parent=0
    #allocation2 [shape = 'u8[8192]{0}', space=vmem, size = 0x2000, scoped, tag = 'input window, operand 0, single buffered']
    #allocation3 [shape = 's32[1]{0}', space=sflag, size = 0x4, scoped, tag = 'scoped memory for tpu_custom_call.1']
    #allocation4 [shape = 's32[1]{0}', space=sflag, size = 0x4, scoped, tag = 'scoped memory for tpu_custom_call.1']
    #allocation5 [shape = 'u8[8192]{0}', space=vmem, size = 0x2000, scoped, tag = 'input window, operand 1, single buffered']
    #allocation6 [shape = 's32[1]{0}', space=sflag, size = 0x4, scoped, tag = 'scoped memory for tpu_custom_call.1']
    #allocation7 [shape = 'u8[8192]{0}', space=vmem, size = 0x2000, scoped, tag = 'input window, operand 2, single buffered']
    #allocation8 [shape = 'u8[8192]{0}', space=vmem, size = 0x2000, scoped, tag = 'output window, operand 0, single buffered']
    %8 = vsyncpa [#allocation3], 0
    %9 = vsyncpa [#allocation6], 0
    %10 = vsyncpa [#allocation4], 0
    // Predicated region
    $region2: #{tpu_custom_call.1} parent=1 // pred_check
      _
    $region3: #{tpu_custom_call.1} parent=1 // pred_check_branch
      %12 = sbr.rel (0) target = $region5
    $region4: #{tpu_custom_call.1} parent=1 // pred_region
      %s14 = ssub.s32 256, 256
      %15 = vsyncadd [#allocation3], %s14
      %s16 = sshll.u32 [#allocation2], 4
      %s17 = int_to_ptr.vmem [resolvable:$true] %s16
      %22 = dma.hbm_to_vmem [thread:$0]  %s0, 256, %s17, [#allocation3], 128, 128, 8
    $region5: #{tpu_custom_call.1} parent=1 // pred_fallthru
      _
    // Predicated region
    $region6: #{tpu_custom_call.1} parent=1 // pred_check
      _
    $region7: #{tpu_custom_call.1} parent=1 // pred_check_branch
      %24 = sbr.rel (0) target = $region9
    $region8: #{tpu_custom_call.1} parent=1 // pred_region
      %s26 = ssub.s32 256, 256
      %27 = vsyncadd [#allocation6], %s26
      %s28 = sshll.u32 [#allocation5], 4
      %s29 = int_to_ptr.vmem [resolvable:$true] %s28
      %34 = dma.hbm_to_vmem [thread:$0]  %s1, 256, %s29, [#allocation6], 128, 128, 8
    $region9: #{tpu_custom_call.1} parent=1 // pred_fallthru
      _
    // Predicated region
    $region10: #{tpu_custom_call.1} parent=1 // pred_check
      _
    $region11: #{tpu_custom_call.1} parent=1 // pred_check_branch
      %36 = sbr.rel (0) target = $region13
    $region12: #{tpu_custom_call.1} parent=1 // pred_region
      %s38 = ssub.s32 256, 256
      %39 = vsyncadd [#allocation6], %s38
      %s40 = sshll.u32 [#allocation7], 4
      %s41 = int_to_ptr.vmem [resolvable:$true] %s40
      %46 = dma.hbm_to_vmem [thread:$0]  %s2, 256, %s41, [#allocation6], 128, 128, 8
    $region13: #{tpu_custom_call.1} parent=1 // pred_fallthru
      _
    // Predicated region
    $region14: #{tpu_custom_call.1} parent=1 // pred_check
      _
    $region15: #{tpu_custom_call.1} parent=1 // pred_check_branch
      %48 = sbr.rel (0) target = $region17
    $region16: #{tpu_custom_call.1} parent=1 // pred_region
      %49 = dma.done [#allocation3], 256
    $region17: #{tpu_custom_call.1} parent=1 // pred_fallthru
      _
    // Predicated region
    $region18: #{tpu_custom_call.1} parent=1 // pred_check
      _
    $region19: #{tpu_custom_call.1} parent=1 // pred_check_branch
      %51 = sbr.rel (0) target = $region21
    $region20: #{tpu_custom_call.1} parent=1 // pred_region
      %52 = dma.done [#allocation6], 256
    $region21: #{tpu_custom_call.1} parent=1 // pred_fallthru
      _
    // Predicated region
    $region22: #{tpu_custom_call.1} parent=1 // pred_check
      _
    $region23: #{tpu_custom_call.1} parent=1 // pred_check_branch
      %54 = sbr.rel (0) target = $region25
    $region24: #{tpu_custom_call.1} parent=1 // pred_region
      %55 = dma.done [#allocation6], 256
    $region25: #{tpu_custom_call.1} parent=1 // pred_fallthru
      _
    %v56 = vld [vmem:[#allocation2] sm:$0xff]
    %v57 = vld [vmem:[#allocation2 + $0x8] sm:$0xff]
    %v58 = vld [vmem:[#allocation5] sm:$0xff]
    %v59 = vld [vmem:[#allocation5 + $0x8] sm:$0xff]
    %v60 = vld [vmem:[#allocation7] sm:$0xff]
    %v61 = vld [vmem:[#allocation7 + $0x8] sm:$0xff]
    %v62 = vmul.f32 %v56, %v58
    %v63 = vmul.f32 %v57, %v59
    %vm64 = vcmask 261120
    %v65 = vsel %vm64, %v62, 0.0
    %66 = vadd.xlane.f32.xlu0 %v65
    %v67 = vpop.xlane.xlu0 %66
    %v68 = vsel %vm64, %v63, 0.0
    %69 = vadd.xlane.f32.xlu0 %v68
    %v70 = vpop.xlane.xlu0 %69
    %v71 = vmul.f32 %v67, 0.17677669
    %v72 = vmul.f32 %v70, 0.17677669
    %75 = vrot.lane.b32.xlu0 %v58, 96
    %v76 = vpop.permute.xlu0 %75
    %77 = vrot.lane.b32.xlu0 %v59, 96
    %v78 = vpop.permute.xlu0 %77
    %v81 = vmul.f32 %v56, %v76
    %v82 = vmul.f32 %v57, %v78
    %v83 = vsel %vm64, %v81, 0.0
    %84 = vadd.xlane.f32.xlu0 %v83
    %v85 = vpop.xlane.xlu0 %84
    %v86 = vsel %vm64, %v82, 0.0
    %87 = vadd.xlane.f32.xlu0 %v86
    %v88 = vpop.xlane.xlu0 %87
    %v89 = vmul.f32 %v85, 0.17677669
    %v90 = vmul.f32 %v88, 0.17677669
    %91 = vrot.lane.b32.xlu0 %v58, 64
    %v92 = vpop.permute.xlu0 %91
    %93 = vrot.lane.b32.xlu0 %v59, 64
    %v94 = vpop.permute.xlu0 %93
    %v97 = vmul.f32 %v56, %v92
    %v98 = vmul.f32 %v57, %v94
    %v99 = vsel %vm64, %v97, 0.0
    %100 = vadd.xlane.f32.xlu0 %v99
    %v101 = vpop.xlane.xlu0 %100
    %v102 = vsel %vm64, %v98, 0.0
    %103 = vadd.xlane.f32.xlu0 %v102
    %v104 = vpop.xlane.xlu0 %103
    %v105 = vmul.f32 %v101, 0.17677669
    %v106 = vmul.f32 %v104, 0.17677669
    %107 = vrot.lane.b32.xlu0 %v58, 32
    %v108 = vpop.permute.xlu0 %107
    %109 = vrot.lane.b32.xlu0 %v59, 32
    %v110 = vpop.permute.xlu0 %109
    %v113 = vmul.f32 %v56, %v108
    %v114 = vmul.f32 %v57, %v110
    %v115 = vsel %vm64, %v113, 0.0
    %116 = vadd.xlane.f32.xlu0 %v115
    %v117 = vpop.xlane.xlu0 %116
    %v118 = vsel %vm64, %v114, 0.0
    %119 = vadd.xlane.f32.xlu0 %v118
    %v120 = vpop.xlane.xlu0 %119
    %v121 = vmul.f32 %v117, 0.17677669
    %v122 = vmul.f32 %v120, 0.17677669
    %125 = vrot.lane.b32.xlu0 %v113, 96
    %v126 = vpop.permute.xlu0 %125
    %127 = vrot.lane.b32.xlu0 %v114, 96
    %v128 = vpop.permute.xlu0 %127
    %v131 = vsel %vm64, %v126, 0.0
    %132 = vadd.xlane.f32.xlu0 %v131
    %v133 = vpop.xlane.xlu0 %132
    %v134 = vsel %vm64, %v128, 0.0
    %135 = vadd.xlane.f32.xlu0 %v134
    %v136 = vpop.xlane.xlu0 %135
    %v137 = vmul.f32 %v133, 0.17677669
    %v138 = vmul.f32 %v136, 0.17677669
    %141 = vrot.lane.b32.xlu0 %v62, 96
    %v142 = vpop.permute.xlu0 %141
    %143 = vrot.lane.b32.xlu0 %v63, 96
    %v144 = vpop.permute.xlu0 %143
    %v147 = vsel %vm64, %v142, 0.0
    %148 = vadd.xlane.f32.xlu0 %v147
    %v149 = vpop.xlane.xlu0 %148
    %v150 = vsel %vm64, %v144, 0.0
    %151 = vadd.xlane.f32.xlu0 %v150
    %v152 = vpop.xlane.xlu0 %151
    %v153 = vmul.f32 %v149, 0.17677669
    %v154 = vmul.f32 %v152, 0.17677669
    %157 = vrot.lane.b32.xlu0 %v81, 96
    %v158 = vpop.permute.xlu0 %157
    %159 = vrot.lane.b32.xlu0 %v82, 96
    %v160 = vpop.permute.xlu0 %159
    %v163 = vsel %vm64, %v158, 0.0
    %164 = vadd.xlane.f32.xlu0 %v163
    %v165 = vpop.xlane.xlu0 %164
    %v166 = vsel %vm64, %v160, 0.0
    %167 = vadd.xlane.f32.xlu0 %v166
    %v168 = vpop.xlane.xlu0 %167
    %v169 = vmul.f32 %v165, 0.17677669
    %v170 = vmul.f32 %v168, 0.17677669
    %173 = vrot.lane.b32.xlu0 %v97, 96
    %v174 = vpop.permute.xlu0 %173
    %175 = vrot.lane.b32.xlu0 %v98, 96
    %v176 = vpop.permute.xlu0 %175
    %v179 = vsel %vm64, %v174, 0.0
    %180 = vadd.xlane.f32.xlu0 %v179
    %v181 = vpop.xlane.xlu0 %180
    %v182 = vsel %vm64, %v176, 0.0
    %183 = vadd.xlane.f32.xlu0 %v182
    %v184 = vpop.xlane.xlu0 %183
    %v185 = vmul.f32 %v181, 0.17677669
    %v186 = vmul.f32 %v184, 0.17677669
    %187 = vrot.lane.b32.xlu0 %v97, 64
    %v188 = vpop.permute.xlu0 %187
    %189 = vrot.lane.b32.xlu0 %v98, 64
    %v190 = vpop.permute.xlu0 %189
    %v193 = vsel %vm64, %v188, 0.0
    %194 = vadd.xlane.f32.xlu0 %v193
    %v195 = vpop.xlane.xlu0 %194
    %v196 = vsel %vm64, %v190, 0.0
    %197 = vadd.xlane.f32.xlu0 %v196
    %v198 = vpop.xlane.xlu0 %197
    %v199 = vmul.f32 %v195, 0.17677669
    %v200 = vmul.f32 %v198, 0.17677669
    %201 = vrot.lane.b32.xlu0 %v113, 64
    %v202 = vpop.permute.xlu0 %201
    %203 = vrot.lane.b32.xlu0 %v114, 64
    %v204 = vpop.permute.xlu0 %203
    %v207 = vsel %vm64, %v202, 0.0
    %208 = vadd.xlane.f32.xlu0 %v207
    %v209 = vpop.xlane.xlu0 %208
    %v210 = vsel %vm64, %v204, 0.0
    %211 = vadd.xlane.f32.xlu0 %v210
    %v212 = vpop.xlane.xlu0 %211
    %v213 = vmul.f32 %v209, 0.17677669
    %v214 = vmul.f32 %v212, 0.17677669
    %215 = vrot.lane.b32.xlu0 %v62, 64
    %v216 = vpop.permute.xlu0 %215
    %217 = vrot.lane.b32.xlu0 %v63, 64
    %v218 = vpop.permute.xlu0 %217
    %v221 = vsel %vm64, %v216, 0.0
    %222 = vadd.xlane.f32.xlu0 %v221
    %v223 = vpop.xlane.xlu0 %222
    %v224 = vsel %vm64, %v218, 0.0
    %225 = vadd.xlane.f32.xlu0 %v224
    %v226 = vpop.xlane.xlu0 %225
    %v227 = vmul.f32 %v223, 0.17677669
    %v228 = vmul.f32 %v226, 0.17677669
    %229 = vrot.lane.b32.xlu0 %v81, 64
    %v230 = vpop.permute.xlu0 %229
    %231 = vrot.lane.b32.xlu0 %v82, 64
    %v232 = vpop.permute.xlu0 %231
    %v235 = vsel %vm64, %v230, 0.0
    %236 = vadd.xlane.f32.xlu0 %v235
    %v237 = vpop.xlane.xlu0 %236
    %v238 = vsel %vm64, %v232, 0.0
    %239 = vadd.xlane.f32.xlu0 %v238
    %v240 = vpop.xlane.xlu0 %239
    %v241 = vmul.f32 %v237, 0.17677669
    %v242 = vmul.f32 %v240, 0.17677669
    %243 = vrot.lane.b32.xlu0 %v81, 32
    %v244 = vpop.permute.xlu0 %243
    %245 = vrot.lane.b32.xlu0 %v82, 32
    %v246 = vpop.permute.xlu0 %245
    %v249 = vsel %vm64, %v244, 0.0
    %250 = vadd.xlane.f32.xlu0 %v249
    %v251 = vpop.xlane.xlu0 %250
    %v252 = vsel %vm64, %v246, 0.0
    %253 = vadd.xlane.f32.xlu0 %v252
    %v254 = vpop.xlane.xlu0 %253
    %v255 = vmul.f32 %v251, 0.17677669
    %v256 = vmul.f32 %v254, 0.17677669
    %257 = vrot.lane.b32.xlu0 %v97, 32
    %v258 = vpop.permute.xlu0 %257
    %259 = vrot.lane.b32.xlu0 %v98, 32
    %v260 = vpop.permute.xlu0 %259
    %v263 = vsel %vm64, %v258, 0.0
    %264 = vadd.xlane.f32.xlu0 %v263
    %v265 = vpop.xlane.xlu0 %264
    %v266 = vsel %vm64, %v260, 0.0
    %267 = vadd.xlane.f32.xlu0 %v266
    %v268 = vpop.xlane.xlu0 %267
    %v269 = vmul.f32 %v265, 0.17677669
    %v270 = vmul.f32 %v268, 0.17677669
    %271 = vrot.lane.b32.xlu0 %v113, 32
    %v272 = vpop.permute.xlu0 %271
    %273 = vrot.lane.b32.xlu0 %v114, 32
    %v274 = vpop.permute.xlu0 %273
    %v277 = vsel %vm64, %v272, 0.0
    %278 = vadd.xlane.f32.xlu0 %v277
    %v279 = vpop.xlane.xlu0 %278
    %v280 = vsel %vm64, %v274, 0.0
    %281 = vadd.xlane.f32.xlu0 %v280
    %v282 = vpop.xlane.xlu0 %281
    %v283 = vmul.f32 %v279, 0.17677669
    %v284 = vmul.f32 %v282, 0.17677669
    %285 = vrot.lane.b32.xlu0 %v62, 32
    %v286 = vpop.permute.xlu0 %285
    %287 = vrot.lane.b32.xlu0 %v63, 32
    %v288 = vpop.permute.xlu0 %287
    %v291 = vsel %vm64, %v286, 0.0
    %292 = vadd.xlane.f32.xlu0 %v291
    %v293 = vpop.xlane.xlu0 %292
    %v294 = vsel %vm64, %v288, 0.0
    %295 = vadd.xlane.f32.xlu0 %v294
    %v296 = vpop.xlane.xlu0 %295
    %v297 = vmul.f32 %v293, 0.17677669
    %v298 = vmul.f32 %v296, 0.17677669
    %v299 = vmax.f32 %v71, %v89
    %v300 = vmax.f32 %v72, %v90
    %v301 = vmax.f32 %v299, %v105
    %v302 = vmax.f32 %v300, %v106
    %v303 = vmax.f32 %v301, %v121
    %v304 = vmax.f32 %v302, %v122
    %v305 = vsub.f32 %v71, %v303
    %v306 = vsub.f32 %v72, %v304
    %v307 = vmul.f32 %v305, 1.442695
    %v308 = vpow.pop %v307
    %v309 = vmul.f32 %v306, 1.442695
    %v310 = vpow.pop %v309
    %v311 = vsub.f32 %v89, %v303
    %v312 = vsub.f32 %v90, %v304
    %v313 = vmul.f32 %v311, 1.442695
    %v314 = vpow.pop %v313
    %v315 = vmul.f32 %v312, 1.442695
    %v316 = vpow.pop %v315
    %v317 = vsub.f32 %v105, %v303
    %v318 = vsub.f32 %v106, %v304
    %v319 = vmul.f32 %v317, 1.442695
    %v320 = vpow.pop %v319
    %v321 = vmul.f32 %v318, 1.442695
    %v322 = vpow.pop %v321
    %v323 = vsub.f32 %v121, %v303
    %v324 = vsub.f32 %v122, %v304
    %v325 = vmul.f32 %v323, 1.442695
    %v326 = vpow.pop %v325
    %v327 = vmul.f32 %v324, 1.442695
    %v328 = vpow.pop %v327
    %v329 = vadd.f32 %v308, %v314
    %v330 = vadd.f32 %v310, %v316
    %v331 = vadd.f32 %v329, %v320
    %v332 = vadd.f32 %v330, %v322
    %v333 = vadd.f32 %v331, %v326
    %v334 = vadd.f32 %v332, %v328
    %v335 = vrcp.pop %v333
    %v336 = vrcp.pop %v334
    %v337 = vmul.f32 %v333, %v335
    %v338 = vmul.f32 %v334, %v336
    %v339 = vsub.f32 2.0, %v337
    %v340 = vsub.f32 2.0, %v338
    %v341 = vmul.f32 %v335, %v339
    %v342 = vmul.f32 %v336, %v340
    %v343 = vmul.f32 %v308, %v341
    %v344 = vmul.f32 %v310, %v342
    %v345 = vmul.f32 %v343, %v60
    %v346 = vmul.f32 %v344, %v61
    %v347 = vmul.f32 %v314, %v341
    %v348 = vmul.f32 %v316, %v342
    %v349 = vmul.f32 %v347, %v60
    %v350 = vmul.f32 %v348, %v61
    %353 = vrot.lane.b32.xlu0 %v349, 96
    %v354 = vpop.permute.xlu0 %353
    %355 = vrot.lane.b32.xlu0 %v350, 96
    %v356 = vpop.permute.xlu0 %355
    %v359 = vadd.f32 %v345, %v354
    %v360 = vadd.f32 %v346, %v356
    %v361 = vmul.f32 %v320, %v341
    %v362 = vmul.f32 %v322, %v342
    %v363 = vmul.f32 %v361, %v60
    %v364 = vmul.f32 %v362, %v61
    %367 = vrot.lane.b32.xlu0 %v363, 64
    %v368 = vpop.permute.xlu0 %367
    %369 = vrot.lane.b32.xlu0 %v364, 64
    %v370 = vpop.permute.xlu0 %369
    %v373 = vadd.f32 %v359, %v368
    %v374 = vadd.f32 %v360, %v370
    %v375 = vmul.f32 %v326, %v341
    %v376 = vmul.f32 %v328, %v342
    %v377 = vmul.f32 %v375, %v60
    %v378 = vmul.f32 %v376, %v61
    %381 = vrot.lane.b32.xlu0 %v377, 32
    %v382 = vpop.permute.xlu0 %381
    %383 = vrot.lane.b32.xlu0 %v378, 32
    %v384 = vpop.permute.xlu0 %383
    %v387 = vadd.f32 %v373, %v382
    %v388 = vadd.f32 %v374, %v384
    %389 = vst.msk [vmem:[#allocation8] sm:$0xff] %vm64, %v387
    %390 = vst.msk [vmem:[#allocation8 + $0x8] sm:$0xff] %vm64, %v388
    %v391 = vmax.f32 %v137, %v153
    %v392 = vmax.f32 %v138, %v154
    %v393 = vmax.f32 %v391, %v169
    %v394 = vmax.f32 %v392, %v170
    %v395 = vmax.f32 %v393, %v185
    %v396 = vmax.f32 %v394, %v186
    %v397 = vsub.f32 %v137, %v395
    %v398 = vsub.f32 %v138, %v396
    %v399 = vmul.f32 %v397, 1.442695
    %v400 = vpow.pop %v399
    %v401 = vmul.f32 %v398, 1.442695
    %v402 = vpow.pop %v401
    %v403 = vsub.f32 %v153, %v395
    %v404 = vsub.f32 %v154, %v396
    %v405 = vmul.f32 %v403, 1.442695
    %v406 = vpow.pop %v405
    %v407 = vmul.f32 %v404, 1.442695
    %v408 = vpow.pop %v407
    %v409 = vsub.f32 %v169, %v395
    %v410 = vsub.f32 %v170, %v396
    %v411 = vmul.f32 %v409, 1.442695
    %v412 = vpow.pop %v411
    %v413 = vmul.f32 %v410, 1.442695
    %v414 = vpow.pop %v413
    %v415 = vsub.f32 %v185, %v395
    %v416 = vsub.f32 %v186, %v396
    %v417 = vmul.f32 %v415, 1.442695
    %v418 = vpow.pop %v417
    %v419 = vmul.f32 %v416, 1.442695
    %v420 = vpow.pop %v419
    %v421 = vadd.f32 %v400, %v406
    %v422 = vadd.f32 %v402, %v408
    %v423 = vadd.f32 %v421, %v412
    %v424 = vadd.f32 %v422, %v414
    %v425 = vadd.f32 %v423, %v418
    %v426 = vadd.f32 %v424, %v420
    %v427 = vrcp.pop %v425
    %v428 = vrcp.pop %v426
    %v429 = vmul.f32 %v425, %v427
    %v430 = vmul.f32 %v426, %v428
    %v431 = vsub.f32 2.0, %v429
    %v432 = vsub.f32 2.0, %v430
    %v433 = vmul.f32 %v427, %v431
    %v434 = vmul.f32 %v428, %v432
    %v435 = vmul.f32 %v400, %v433
    %v436 = vmul.f32 %v402, %v434
    %v437 = vmul.f32 %v435, %v60
    %v438 = vmul.f32 %v436, %v61
    %v439 = vmul.f32 %v406, %v433
    %v440 = vmul.f32 %v408, %v434
    %v441 = vmul.f32 %v439, %v60
    %v442 = vmul.f32 %v440, %v61
    %445 = vrot.lane.b32.xlu0 %v441, 96
    %v446 = vpop.permute.xlu0 %445
    %447 = vrot.lane.b32.xlu0 %v442, 96
    %v448 = vpop.permute.xlu0 %447
    %v451 = vadd.f32 %v437, %v446
    %v452 = vadd.f32 %v438, %v448
    %v453 = vmul.f32 %v412, %v433
    %v454 = vmul.f32 %v414, %v434
    %v455 = vmul.f32 %v453, %v60
    %v456 = vmul.f32 %v454, %v61
    %459 = vrot.lane.b32.xlu0 %v455, 64
    %v460 = vpop.permute.xlu0 %459
    %461 = vrot.lane.b32.xlu0 %v456, 64
    %v462 = vpop.permute.xlu0 %461
    %v465 = vadd.f32 %v451, %v460
    %v466 = vadd.f32 %v452, %v462
    %v467 = vmul.f32 %v418, %v433
    %v468 = vmul.f32 %v420, %v434
    %v469 = vmul.f32 %v467, %v60
    %v470 = vmul.f32 %v468, %v61
    %473 = vrot.lane.b32.xlu0 %v469, 32
    %v474 = vpop.permute.xlu0 %473
    %475 = vrot.lane.b32.xlu0 %v470, 32
    %v476 = vpop.permute.xlu0 %475
    %v479 = vadd.f32 %v465, %v474
    %v480 = vadd.f32 %v466, %v476
    %483 = vrot.lane.b32.xlu0 %v479, 32
    %v484 = vpop.permute.xlu0 %483
    %485 = vrot.lane.b32.xlu0 %v480, 32
    %v486 = vpop.permute.xlu0 %485
    %vm489 = vcmask 523520
    %490 = vst.msk [vmem:[#allocation8] sm:$0xff] %vm489, %v484
    %491 = vst.msk [vmem:[#allocation8 + $0x8] sm:$0xff] %vm489, %v486
    %v492 = vmax.f32 %v199, %v213
    %v493 = vmax.f32 %v200, %v214
    %v494 = vmax.f32 %v492, %v227
    %v495 = vmax.f32 %v493, %v228
    %v496 = vmax.f32 %v494, %v241
    %v497 = vmax.f32 %v495, %v242
    %v498 = vsub.f32 %v199, %v496
    %v499 = vsub.f32 %v200, %v497
    %v500 = vmul.f32 %v498, 1.442695
    %v501 = vpow.pop %v500
    %v502 = vmul.f32 %v499, 1.442695
    %v503 = vpow.pop %v502
    %v504 = vsub.f32 %v213, %v496
    %v505 = vsub.f32 %v214, %v497
    %v506 = vmul.f32 %v504, 1.442695
    %v507 = vpow.pop %v506
    %v508 = vmul.f32 %v505, 1.442695
    %v509 = vpow.pop %v508
    %v510 = vsub.f32 %v227, %v496
    %v511 = vsub.f32 %v228, %v497
    %v512 = vmul.f32 %v510, 1.442695
    %v513 = vpow.pop %v512
    %v514 = vmul.f32 %v511, 1.442695
    %v515 = vpow.pop %v514
    %v516 = vsub.f32 %v241, %v496
    %v517 = vsub.f32 %v242, %v497
    %v518 = vmul.f32 %v516, 1.442695
    %v519 = vpow.pop %v518
    %v520 = vmul.f32 %v517, 1.442695
    %v521 = vpow.pop %v520
    %v522 = vadd.f32 %v501, %v507
    %v523 = vadd.f32 %v503, %v509
    %v524 = vadd.f32 %v522, %v513
    %v525 = vadd.f32 %v523, %v515
    %v526 = vadd.f32 %v524, %v519
    %v527 = vadd.f32 %v525, %v521
    %v528 = vrcp.pop %v526
    %v529 = vrcp.pop %v527
    %v530 = vmul.f32 %v526, %v528
    %v531 = vmul.f32 %v527, %v529
    %v532 = vsub.f32 2.0, %v530
    %v533 = vsub.f32 2.0, %v531
    %v534 = vmul.f32 %v528, %v532
    %v535 = vmul.f32 %v529, %v533
    %v536 = vmul.f32 %v501, %v534
    %v537 = vmul.f32 %v503, %v535
    %v538 = vmul.f32 %v536, %v60
    %v539 = vmul.f32 %v537, %v61
    %v540 = vmul.f32 %v507, %v534
    %v541 = vmul.f32 %v509, %v535
    %v542 = vmul.f32 %v540, %v60
    %v543 = vmul.f32 %v541, %v61
    %546 = vrot.lane.b32.xlu0 %v542, 96
    %v547 = vpop.permute.xlu0 %546
    %548 = vrot.lane.b32.xlu0 %v543, 96
    %v549 = vpop.permute.xlu0 %548
    %v552 = vadd.f32 %v538, %v547
    %v553 = vadd.f32 %v539, %v549
    %v554 = vmul.f32 %v513, %v534
    %v555 = vmul.f32 %v515, %v535
    %v556 = vmul.f32 %v554, %v60
    %v557 = vmul.f32 %v555, %v61
    %560 = vrot.lane.b32.xlu0 %v556, 64
    %v561 = vpop.permute.xlu0 %560
    %562 = vrot.lane.b32.xlu0 %v557, 64
    %v563 = vpop.permute.xlu0 %562
    %v566 = vadd.f32 %v552, %v561
    %v567 = vadd.f32 %v553, %v563
    %v568 = vmul.f32 %v519, %v534
    %v569 = vmul.f32 %v521, %v535
    %v570 = vmul.f32 %v568, %v60
    %v571 = vmul.f32 %v569, %v61
    %574 = vrot.lane.b32.xlu0 %v570, 32
    %v575 = vpop.permute.xlu0 %574
    %576 = vrot.lane.b32.xlu0 %v571, 32
    %v577 = vpop.permute.xlu0 %576
    %v580 = vadd.f32 %v566, %v575
    %v581 = vadd.f32 %v567, %v577
    %584 = vrot.lane.b32.xlu0 %v580, 64
    %v585 = vpop.permute.xlu0 %584
    %586 = vrot.lane.b32.xlu0 %v581, 64
    %v587 = vpop.permute.xlu0 %586
    %vm590 = vcmask 785920
    %591 = vst.msk [vmem:[#allocation8] sm:$0xff] %vm590, %v585
    %592 = vst.msk [vmem:[#allocation8 + $0x8] sm:$0xff] %vm590, %v587
    %v593 = vmax.f32 %v255, %v269
    %v594 = vmax.f32 %v256, %v270
    %v595 = vmax.f32 %v593, %v283
    %v596 = vmax.f32 %v594, %v284
    %v597 = vmax.f32 %v595, %v297
    %v598 = vmax.f32 %v596, %v298
    %v599 = vsub.f32 %v255, %v597
    %v600 = vsub.f32 %v256, %v598
    %v601 = vmul.f32 %v599, 1.442695
    %v602 = vpow.pop %v601
    %v603 = vmul.f32 %v600, 1.442695
    %v604 = vpow.pop %v603
    %v605 = vsub.f32 %v269, %v597
    %v606 = vsub.f32 %v270, %v598
    %v607 = vmul.f32 %v605, 1.442695
    %v608 = vpow.pop %v607
    %v609 = vmul.f32 %v606, 1.442695
    %v610 = vpow.pop %v609
    %v611 = vsub.f32 %v283, %v597
    %v612 = vsub.f32 %v284, %v598
    %v613 = vmul.f32 %v611, 1.442695
    %v614 = vpow.pop %v613
    %v615 = vmul.f32 %v612, 1.442695
    %v616 = vpow.pop %v615
    %v617 = vsub.f32 %v297, %v597
    %v618 = vsub.f32 %v298, %v598
    %v619 = vmul.f32 %v617, 1.442695
    %v620 = vpow.pop %v619
    %v621 = vmul.f32 %v618, 1.442695
    %v622 = vpow.pop %v621
    %v623 = vadd.f32 %v602, %v608
    %v624 = vadd.f32 %v604, %v610
    %v625 = vadd.f32 %v623, %v614
    %v626 = vadd.f32 %v624, %v616
    %v627 = vadd.f32 %v625, %v620
    %v628 = vadd.f32 %v626, %v622
    %v629 = vrcp.pop %v627
    %v630 = vrcp.pop %v628
    %v631 = vmul.f32 %v627, %v629
    %v632 = vmul.f32 %v628, %v630
    %v633 = vsub.f32 2.0, %v631
    %v634 = vsub.f32 2.0, %v632
    %v635 = vmul.f32 %v629, %v633
    %v636 = vmul.f32 %v630, %v634
    %v637 = vmul.f32 %v602, %v635
    %v638 = vmul.f32 %v604, %v636
    %v639 = vmul.f32 %v637, %v60
    %v640 = vmul.f32 %v638, %v61
    %v641 = vmul.f32 %v608, %v635
    %v642 = vmul.f32 %v610, %v636
    %v643 = vmul.f32 %v641, %v60
    %v644 = vmul.f32 %v642, %v61
    %647 = vrot.lane.b32.xlu0 %v643, 96
    %v648 = vpop.permute.xlu0 %647
    %649 = vrot.lane.b32.xlu0 %v644, 96
    %v650 = vpop.permute.xlu0 %649
    %v653 = vadd.f32 %v639, %v648
    %v654 = vadd.f32 %v640, %v650
    %v655 = vmul.f32 %v614, %v635
    %v656 = vmul.f32 %v616, %v636
    %v657 = vmul.f32 %v655, %v60
    %v658 = vmul.f32 %v656, %v61
    %661 = vrot.lane.b32.xlu0 %v657, 64
    %v662 = vpop.permute.xlu0 %661
    %663 = vrot.lane.b32.xlu0 %v658, 64
    %v664 = vpop.permute.xlu0 %663
    %v667 = vadd.f32 %v653, %v662
    %v668 = vadd.f32 %v654, %v664
    %v669 = vmul.f32 %v620, %v635
    %v670 = vmul.f32 %v622, %v636
    %v671 = vmul.f32 %v669, %v60
    %v672 = vmul.f32 %v670, %v61
    %675 = vrot.lane.b32.xlu0 %v671, 32
    %v676 = vpop.permute.xlu0 %675
    %677 = vrot.lane.b32.xlu0 %v672, 32
    %v678 = vpop.permute.xlu0 %677
    %v681 = vadd.f32 %v667, %v676
    %v682 = vadd.f32 %v668, %v678
    %685 = vrot.lane.b32.xlu0 %v681, 96
    %v686 = vpop.permute.xlu0 %685
    %687 = vrot.lane.b32.xlu0 %v682, 96
    %v688 = vpop.permute.xlu0 %687
    %vm691 = vcmask 1048320
    %692 = vst.msk [vmem:[#allocation8] sm:$0xff] %vm691, %v686
    %693 = vst.msk [vmem:[#allocation8 + $0x8] sm:$0xff] %vm691, %v688
    // Predicated region
    $region26: #{tpu_custom_call.1} parent=1 // pred_check
      _
    $region27: #{tpu_custom_call.1} parent=1 // pred_check_branch
      %695 = sbr.rel (0) target = $region29
    $region28: #{tpu_custom_call.1} parent=1 // pred_region
      %s697 = ssub.s32 256, 256
      %698 = vsyncadd [#allocation4], %s697
      %s699 = sshll.u32 [#allocation8], 4
      %s700 = int_to_ptr.vmem [resolvable:$true] %s699
      %705 = dma.vmem_to_hbm [thread:$0]  %s700, 256, %s3, [#allocation4], 128, 128, 8
    $region29: #{tpu_custom_call.1} parent=1 // pred_fallthru
      _
    // Predicated region
    $region30: #{tpu_custom_call.1} parent=1 // pred_check
      _
    $region31: #{tpu_custom_call.1} parent=1 // pred_check_branch
      %707 = sbr.rel (0) target = $region33
    $region32: #{tpu_custom_call.1} parent=1 // pred_region
      %708 = dma.done [#allocation4], 256
    $region33: #{tpu_custom_call.1} parent=1 // pred_fallthru
      _
    %709 = vsyncpa [#allocation3], 1
    %710 = vsyncpa [#allocation6], 1
    %711 = vsyncpa [#allocation4], 1

</llo_original>
